<compile_context>
chip_gen: v7x
topology: tpu7x:2x2x1
jax: 0.10.0
libtpu: 0.0.40
codegen_flags: <defaults>
</compile_context>

<pallas_src>
import functools
import math

import jax
import jax.numpy as jnp
from jax.experimental import pallas as pl
from jax.experimental.pallas import tpu as pltpu


def _combined_loss_kernel(x_ref, lab_ref, out_ref,
                          inter_ref, card_ref, ce_ref, *, num_classes):
    """Per-sample partial sums over one (C, G, 8, 128) logits tile.

    x_ref:    (C, G, 8, 128) logits (any float dtype, upcast to f32)
    lab_ref:  (G, 8, 128)    int32 labels; pad pixels hold sentinel class C
    out_ref:  (2C+1, 128)    per-sample partials: [inter_c | card_c | ce] rows
    inter_ref/card_ref: (C, 8, 128) f32 scratch accumulators
    ce_ref:   (8, 128) f32 scratch accumulator
    """
    i = pl.program_id(1)
    C = num_classes

    @pl.when(i == 0)
    def _():
        inter_ref[...] = jnp.zeros_like(inter_ref)
        card_ref[...] = jnp.zeros_like(card_ref)
        ce_ref[...] = jnp.zeros_like(ce_ref)

    labels = lab_ref[...]                                    # (G, 8, 128) int32
    xs = [x_ref[c].astype(jnp.float32) for c in range(C)]    # C x (G, 8, 128)

    # Numerically stable softmax over the (leading) class axis: pure VPU/EUP
    # work on dense (G, 8, 128) slabs, no cross-lane traffic.
    m = xs[0]
    for c in range(1, C):
        m = jnp.maximum(m, xs[c])

    s = None        # sum_c exp(x_c - m)
    x_true = None   # logit of the true class (one-hot select)
    exps = []
    for c in range(C):
        e_c = jnp.exp(xs[c] - m)
        exps.append(e_c)
        s = e_c if s is None else s + e_c
        oh_c = (labels == c).astype(jnp.float32)
        t = xs[c] * oh_c
        x_true = t if x_true is None else x_true + t

    inv_s = pl.reciprocal(s)                                 # exact reciprocal

    # Per-class partial sums -> one (8, 128) vreg per class. The reduction
    # over the row-group axis is plain VPU adds of whole vregs; the cross-lane
    # reduce is deferred to the per-sample epilogue.
    for c in range(C):
        oh_c = (labels == c).astype(jnp.float32)
        p_c = exps[c] * inv_s
        inter_ref[c] = inter_ref[c] + jnp.sum(p_c * oh_c, axis=0)
        card_ref[c] = card_ref[c] + jnp.sum(p_c + oh_c, axis=0)

    # Cross-entropy per pixel: -log p_true = log(sum exp(x - m)) + m - x_true.
    ce_ref[...] = ce_ref[...] + jnp.sum(jnp.log(s) + m - x_true, axis=0)

    @pl.when(i == pl.num_programs(1) - 1)
    def _():
        # Single cross-sublane reduce per sample; results stay lane-dense.
        out_ref[0:C, :] = jnp.sum(inter_ref[...], axis=1)              # (C, 128)
        out_ref[C:2 * C, :] = jnp.sum(card_ref[...], axis=1)           # (C, 128)
        out_ref[2 * C:2 * C + 1, :] = jnp.sum(ce_ref[...], axis=0,
                                              keepdims=True)           # (1, 128)


def combined_loss(outputs, labels, *, vmem_input_budget_bytes=20 * 1024 * 1024):
    """outputs: (N, C, D, H, W) float logits; labels: (N, D, H, W) class ids."""
    N, C, D, H, W = outputs.shape
    S = D * H * W
    eps = 1e-6
    x_itemsize = jnp.dtype(outputs.dtype).itemsize

    rows_total = (S + 127) // 128
    rows8 = ((rows_total + 7) // 8) * 8            # sublane-aligned row count

    # Tile sizing from a VMEM budget: double-buffered inputs plus a
    # conservative estimate of the per-row elementwise f32 temporaries.
    per_row_bytes = 128 * (2 * (C * x_itemsize + 4) + (2 * C + 8) * 4)
    max_rows = max(int(vmem_input_budget_bytes // per_row_bytes), 8)
    tile_rows = min(rows8, max((max_rows // 8) * 8, 8))
    num_tiles = (rows8 + tile_rows - 1) // tile_rows
    rows_pad = num_tiles * tile_rows
    S_pad = rows_pad * 128

    # Free reshapes; padding only when D*H*W doesn't fill the tiling exactly.
    x = outputs.reshape(N, C, S)
    lab = labels.reshape(N, S).astype(jnp.int32)
    if S_pad != S:
        x = jnp.pad(x, ((0, 0), (0, 0), (0, S_pad - S)))               # zeros
        lab = jnp.pad(lab, ((0, 0), (0, S_pad - S)), constant_values=C)
    G_total = rows_pad // 8
    tile_g = tile_rows // 8
    x = x.reshape(N, C, G_total, 8, 128)
    lab = lab.reshape(N, G_total, 8, 128)

    kernel = functools.partial(_combined_loss_kernel, num_classes=C)

    partials = pl.pallas_call(
        kernel,
        out_shape=jax.ShapeDtypeStruct((N, 2 * C + 1, 128), jnp.float32),
        grid_spec=pltpu.PrefetchScalarGridSpec(
            num_scalar_prefetch=0,
            grid=(N, num_tiles),
            in_specs=[
                pl.BlockSpec((None, C, tile_g, 8, 128),
                             lambda n, i: (n, 0, i, 0, 0)),
                pl.BlockSpec((None, tile_g, 8, 128),
                             lambda n, i: (n, i, 0, 0)),
            ],
            out_specs=pl.BlockSpec((None, 2 * C + 1, 128),
                                   lambda n, i: (n, 0, 0)),
            scratch_shapes=[
                pltpu.VMEM((C, 8, 128), jnp.float32),   # intersection acc
                pltpu.VMEM((C, 8, 128), jnp.float32),   # cardinality acc
                pltpu.VMEM((8, 128), jnp.float32),      # cross-entropy acc
            ],
        ),
        compiler_params=pltpu.CompilerParams(
            dimension_semantics=("parallel", "arbitrary"),
            vmem_limit_bytes=32 * 1024 * 1024),
    )(x, lab)

    # Tiny final combine in plain JAX (N*(2C+1)*128 floats).
    inter = jnp.sum(partials[:, 0:C, :], axis=(0, 2))                  # (C,)
    card = jnp.sum(partials[:, C:2 * C, :], axis=(0, 2))               # (C,)
    ce_sum = jnp.sum(partials[:, 2 * C, :])

    # Exact correction for pad pixels (zero logits -> uniform probs; sentinel
    # label C -> one-hot is all zeros, so intersection is unaffected).
    pad_total = float(N * (S_pad - S))
    card = card - pad_total / C
    ce_sum = ce_sum - pad_total * math.log(C)

    dice = jnp.mean(1.0 - (2.0 * inter + eps) / (card + eps))
    ce_mean = ce_sum / float(N * S)
    return dice + ce_mean


def _reference_combined_loss(outputs, labels):
    """Pure-JAX reference mirroring the PyTorch module."""
    C = outputs.shape[1]
    probs = jax.nn.softmax(outputs, axis=1)
    onehot = jax.nn.one_hot(labels, C, dtype=jnp.float32)        # (N, D, H, W, C)
    onehot = jnp.transpose(onehot, (0, 4, 1, 2, 3))              # (N, C, D, H, W)
    dims = (0, 2, 3, 4)
    inter = jnp.sum(probs * onehot, axis=dims)
    card = jnp.sum(probs + onehot, axis=dims)
    dice = jnp.mean(1.0 - (2.0 * inter + 1e-6) / (card + 1e-6))
    logp = jax.nn.log_softmax(outputs, axis=1)
    ce = -jnp.mean(jnp.sum(logp * onehot, axis=1))
    return dice + ce


if __name__ == "__main__":
    num_classes = 2
    N, C, D, H, W = 2, num_classes, 4, 8, 8

    key = jax.random.PRNGKey(0)
    k1, k2 = jax.random.split(key)
    outputs = jax.random.normal(k1, (N, C, D, H, W), dtype=jnp.float32)
    labels = jax.random.randint(k2, (N, D, H, W), 0, num_classes, dtype=jnp.int32)

    loss = jax.block_until_ready(combined_loss(outputs, labels))
    ref = jax.block_until_ready(_reference_combined_loss(outputs, labels))

    assert jnp.allclose(loss, ref, rtol=1e-4, atol=1e-5), (loss, ref)
    print("KERNEL_OK")
</pallas_src>

<mosaic_0001>
module attributes {stable_mosaic.version = 11 : i64} {
  func.func @_combined_loss_kernel(%arg0: i32, %arg1: i32, %arg2: memref<1x2x1x8x128xf32, #tpu.memory_space<vmem>>, %arg3: memref<1x1x8x128xi32, #tpu.memory_space<vmem>>, %arg4: memref<1x5x128xf32, #tpu.memory_space<vmem>>, %arg5: memref<2x8x128xf32, #tpu.memory_space<vmem>>, %arg6: memref<2x8x128xf32, #tpu.memory_space<vmem>>, %arg7: memref<8x128xf32, #tpu.memory_space<vmem>>) attributes {dimension_semantics = [#tpu.dimension_semantics<parallel>, #tpu.dimension_semantics<arbitrary>], iteration_bounds = array<i64: 2, 1>, scalar_prefetch = 0 : i64, scratch_operands = 3 : i64, tpu.core_type = #tpu.core_type<tc>, window_params = [{transform_indices = @transform_0, window_bounds = array<i64: 1, 2, 1, 8, 128>}, {transform_indices = @transform_1, window_bounds = array<i64: 1, 1, 8, 128>}, {transform_indices = @transform_2, window_bounds = array<i64: 1, 5, 128>}]} {
    %c0_i32 = arith.constant 0 : i32
    %0 = arith.cmpi eq, %arg1, %c0_i32 : i32
    %1 = arith.extui %0 : i1 to i32
    %c0_i32_0 = arith.constant 0 : i32
    %2 = arith.cmpi ne, %1, %c0_i32_0 : i32
    scf.if %2 {
      %cst_50 = arith.constant 0.000000e+00 : f32
      %79 = vector.broadcast %cst_50 : f32 to vector<2x8x128xf32>
      %c0_51 = arith.constant 0 : index
      %c0_52 = arith.constant 0 : index
      %c0_53 = arith.constant 0 : index
      %80 = vector.load %arg5[%c0_51, %c0_52, %c0_53] : memref<2x8x128xf32, #tpu.memory_space<vmem>>, vector<2x8x128xf32>
      tpu.vector_store %arg5[%c0_51, %c0_52, %c0_53], %79 {strides = array<i32>} : memref<2x8x128xf32, #tpu.memory_space<vmem>>, vector<2x8x128xf32>,
      %cst_54 = arith.constant 0.000000e+00 : f32
      %81 = vector.broadcast %cst_54 : f32 to vector<2x8x128xf32>
      %c0_55 = arith.constant 0 : index
      %c0_56 = arith.constant 0 : index
      %c0_57 = arith.constant 0 : index
      %82 = vector.load %arg6[%c0_55, %c0_56, %c0_57] : memref<2x8x128xf32, #tpu.memory_space<vmem>>, vector<2x8x128xf32>
      tpu.vector_store %arg6[%c0_55, %c0_56, %c0_57], %81 {strides = array<i32>} : memref<2x8x128xf32, #tpu.memory_space<vmem>>, vector<2x8x128xf32>,
      %cst_58 = arith.constant 0.000000e+00 : f32
      %83 = vector.broadcast %cst_58 : f32 to vector<8x128xf32>
      %c0_59 = arith.constant 0 : index
      %c0_60 = arith.constant 0 : index
      %84 = vector.load %arg7[%c0_59, %c0_60] : memref<8x128xf32, #tpu.memory_space<vmem>>, vector<8x128xf32>
      tpu.vector_store %arg7[%c0_59, %c0_60], %83 {strides = array<i32>} : memref<8x128xf32, #tpu.memory_space<vmem>>, vector<8x128xf32>,
    } else {
    }
    %c0 = arith.constant 0 : index
    %c0_1 = arith.constant 0 : index
    %c0_2 = arith.constant 0 : index
    %c0_3 = arith.constant 0 : index
    %3 = vector.load %arg3[%c0, %c0_1, %c0_2, %c0_3] : memref<1x1x8x128xi32, #tpu.memory_space<vmem>>, vector<1x1x8x128xi32>
    %4 = vector.shape_cast %3 : vector<1x1x8x128xi32> to vector<1x8x128xi32>
    %c0_4 = arith.constant 0 : index
    %c0_5 = arith.constant 0 : index
    %c0_6 = arith.constant 0 : index
    %c0_7 = arith.constant 0 : index
    %c0_8 = arith.constant 0 : index
    %5 = vector.load %arg2[%c0_4, %c0_5, %c0_6, %c0_7, %c0_8] : memref<1x2x1x8x128xf32, #tpu.memory_space<vmem>>, vector<1x1x1x8x128xf32>
    %6 = vector.shape_cast %5 : vector<1x1x1x8x128xf32> to vector<1x8x128xf32>
    %c0_9 = arith.constant 0 : index
    %c1 = arith.constant 1 : index
    %c0_10 = arith.constant 0 : index
    %c0_11 = arith.constant 0 : index
    %c0_12 = arith.constant 0 : index
    %7 = vector.load %arg2[%c0_9, %c1, %c0_10, %c0_11, %c0_12] : memref<1x2x1x8x128xf32, #tpu.memory_space<vmem>>, vector<1x1x1x8x128xf32>
    %8 = vector.shape_cast %7 : vector<1x1x1x8x128xf32> to vector<1x8x128xf32>
    %9 = arith.maximumf %6, %8 : vector<1x8x128xf32>
    %10 = arith.subf %6, %9 : vector<1x8x128xf32>
    %11 = math.exp %10 : vector<1x8x128xf32>
    %c0_i32_13 = arith.constant 0 : i32
    %12 = vector.broadcast %c0_i32_13 : i32 to vector<1x8x128xi32>
    %13 = arith.cmpi eq, %4, %12 : vector<1x8x128xi32>
    %14 = arith.extui %13 : vector<1x8x128xi1> to vector<1x8x128xi32>
    %15 = arith.sitofp %14 : vector<1x8x128xi32> to vector<1x8x128xf32>
    %16 = arith.mulf %6, %15 : vector<1x8x128xf32>
    %17 = arith.subf %8, %9 : vector<1x8x128xf32>
    %18 = math.exp %17 : vector<1x8x128xf32>
    %19 = arith.addf %11, %18 : vector<1x8x128xf32>
    %c1_i32 = arith.constant 1 : i32
    %20 = vector.broadcast %c1_i32 : i32 to vector<1x8x128xi32>
    %21 = arith.cmpi eq, %4, %20 : vector<1x8x128xi32>
    %22 = arith.extui %21 : vector<1x8x128xi1> to vector<1x8x128xi32>
    %23 = arith.sitofp %22 : vector<1x8x128xi32> to vector<1x8x128xf32>
    %24 = arith.mulf %8, %23 : vector<1x8x128xf32>
    %25 = arith.addf %16, %24 : vector<1x8x128xf32>
    %26 = tpu.reciprocal %19 : vector<1x8x128xf32> -> vector<1x8x128xf32>
    %c0_i32_14 = arith.constant 0 : i32
    %27 = vector.broadcast %c0_i32_14 : i32 to vector<1x8x128xi32>
    %28 = arith.cmpi eq, %4, %27 : vector<1x8x128xi32>
    %29 = arith.extui %28 : vector<1x8x128xi1> to vector<1x8x128xi32>
    %30 = arith.sitofp %29 : vector<1x8x128xi32> to vector<1x8x128xf32>
    %31 = arith.mulf %11, %26 : vector<1x8x128xf32>
    %c0_15 = arith.constant 0 : index
    %c0_16 = arith.constant 0 : index
    %c0_17 = arith.constant 0 : index
    %32 = vector.load %arg5[%c0_15, %c0_16, %c0_17] : memref<2x8x128xf32, #tpu.memory_space<vmem>>, vector<1x8x128xf32>
    %33 = vector.shape_cast %32 : vector<1x8x128xf32> to vector<8x128xf32>
    %34 = arith.mulf %31, %30 : vector<1x8x128xf32>
    %cst = arith.constant dense<0.000000e+00> : vector<8x128xf32>
    %35 = vector.multi_reduction <add>, %34, %cst [0] : vector<1x8x128xf32> to vector<8x128xf32>
    %36 = arith.addf %33, %35 : vector<8x128xf32>
    %c0_18 = arith.constant 0 : index
    %c0_19 = arith.constant 0 : index
    %c0_20 = arith.constant 0 : index
    %37 = vector.load %arg5[%c0_18, %c0_19, %c0_20] : memref<2x8x128xf32, #tpu.memory_space<vmem>>, vector<1x8x128xf32>
    %38 = vector.shape_cast %37 : vector<1x8x128xf32> to vector<8x128xf32>
    %39 = vector.shape_cast %36 : vector<8x128xf32> to vector<1x8x128xf32>
    tpu.vector_store %arg5[%c0_18, %c0_19, %c0_20], %39 {strides = array<i32>} : memref<2x8x128xf32, #tpu.memory_space<vmem>>, vector<1x8x128xf32>,
    %c0_21 = arith.constant 0 : index
    %c0_22 = arith.constant 0 : index
    %c0_23 = arith.constant 0 : index
    %40 = vector.load %arg6[%c0_21, %c0_22, %c0_23] : memref<2x8x128xf32, #tpu.memory_space<vmem>>, vector<1x8x128xf32>
    %41 = vector.shape_cast %40 : vector<1x8x128xf32> to vector<8x128xf32>
    %42 = arith.addf %31, %30 : vector<1x8x128xf32>
    %cst_24 = arith.constant dense<0.000000e+00> : vector<8x128xf32>
    %43 = vector.multi_reduction <add>, %42, %cst_24 [0] : vector<1x8x128xf32> to vector<8x128xf32>
    %44 = arith.addf %41, %43 : vector<8x128xf32>
    %c0_25 = arith.constant 0 : index
    %c0_26 = arith.constant 0 : index
    %c0_27 = arith.constant 0 : index
    %45 = vector.load %arg6[%c0_25, %c0_26, %c0_27] : memref<2x8x128xf32, #tpu.memory_space<vmem>>, vector<1x8x128xf32>
    %46 = vector.shape_cast %45 : vector<1x8x128xf32> to vector<8x128xf32>
    %47 = vector.shape_cast %44 : vector<8x128xf32> to vector<1x8x128xf32>
    tpu.vector_store %arg6[%c0_25, %c0_26, %c0_27], %47 {strides = array<i32>} : memref<2x8x128xf32, #tpu.memory_space<vmem>>, vector<1x8x128xf32>,
    %c1_i32_28 = arith.constant 1 : i32
    %48 = vector.broadcast %c1_i32_28 : i32 to vector<1x8x128xi32>
    %49 = arith.cmpi eq, %4, %48 : vector<1x8x128xi32>
    %50 = arith.extui %49 : vector<1x8x128xi1> to vector<1x8x128xi32>
    %51 = arith.sitofp %50 : vector<1x8x128xi32> to vector<1x8x128xf32>
    %52 = arith.mulf %18, %26 : vector<1x8x128xf32>
    %c1_29 = arith.constant 1 : index
    %c0_30 = arith.constant 0 : index
    %c0_31 = arith.constant 0 : index
    %53 = vector.load %arg5[%c1_29, %c0_30, %c0_31] : memref<2x8x128xf32, #tpu.memory_space<vmem>>, vector<1x8x128xf32>
    %54 = vector.shape_cast %53 : vector<1x8x128xf32> to vector<8x128xf32>
    %55 = arith.mulf %52, %51 : vector<1x8x128xf32>
    %cst_32 = arith.constant dense<0.000000e+00> : vector<8x128xf32>
    %56 = vector.multi_reduction <add>, %55, %cst_32 [0] : vector<1x8x128xf32> to vector<8x128xf32>
    %57 = arith.addf %54, %56 : vector<8x128xf32>
    %c1_33 = arith.constant 1 : index
    %c0_34 = arith.constant 0 : index
    %c0_35 = arith.constant 0 : index
    %58 = vector.load %arg5[%c1_33, %c0_34, %c0_35] : memref<2x8x128xf32, #tpu.memory_space<vmem>>, vector<1x8x128xf32>
    %59 = vector.shape_cast %58 : vector<1x8x128xf32> to vector<8x128xf32>
    %60 = vector.shape_cast %57 : vector<8x128xf32> to vector<1x8x128xf32>
    tpu.vector_store %arg5[%c1_33, %c0_34, %c0_35], %60 {strides = array<i32>} : memref<2x8x128xf32, #tpu.memory_space<vmem>>, vector<1x8x128xf32>,
    %c1_36 = arith.constant 1 : index
    %c0_37 = arith.constant 0 : index
    %c0_38 = arith.constant 0 : index
    %61 = vector.load %arg6[%c1_36, %c0_37, %c0_38] : memref<2x8x128xf32, #tpu.memory_space<vmem>>, vector<1x8x128xf32>
    %62 = vector.shape_cast %61 : vector<1x8x128xf32> to vector<8x128xf32>
    %63 = arith.addf %52, %51 : vector<1x8x128xf32>
    %cst_39 = arith.constant dense<0.000000e+00> : vector<8x128xf32>
    %64 = vector.multi_reduction <add>, %63, %cst_39 [0] : vector<1x8x128xf32> to vector<8x128xf32>
    %65 = arith.addf %62, %64 : vector<8x128xf32>
    %c1_40 = arith.constant 1 : index
    %c0_41 = arith.constant 0 : index
    %c0_42 = arith.constant 0 : index
    %66 = vector.load %arg6[%c1_40, %c0_41, %c0_42] : memref<2x8x128xf32, #tpu.memory_space<vmem>>, vector<1x8x128xf32>
    %67 = vector.shape_cast %66 : vector<1x8x128xf32> to vector<8x128xf32>
    %68 = vector.shape_cast %65 : vector<8x128xf32> to vector<1x8x128xf32>
    tpu.vector_store %arg6[%c1_40, %c0_41, %c0_42], %68 {strides = array<i32>} : memref<2x8x128xf32, #tpu.memory_space<vmem>>, vector<1x8x128xf32>,
    %c0_43 = arith.constant 0 : index
    %c0_44 = arith.constant 0 : index
    %69 = vector.load %arg7[%c0_43, %c0_44] : memref<8x128xf32, #tpu.memory_space<vmem>>, vector<8x128xf32>
    %70 = math.log %19 : vector<1x8x128xf32>
    %71 = arith.addf %70, %9 : vector<1x8x128xf32>
    %72 = arith.subf %71, %25 : vector<1x8x128xf32>
    %cst_45 = arith.constant dense<0.000000e+00> : vector<8x128xf32>
    %73 = vector.multi_reduction <add>, %72, %cst_45 [0] : vector<1x8x128xf32> to vector<8x128xf32>
    %74 = arith.addf %69, %73 : vector<8x128xf32>
    %c0_46 = arith.constant 0 : index
    %c0_47 = arith.constant 0 : index
    %75 = vector.load %arg7[%c0_46, %c0_47] : memref<8x128xf32, #tpu.memory_space<vmem>>, vector<8x128xf32>
    tpu.vector_store %arg7[%c0_46, %c0_47], %74 {strides = array<i32>} : memref<8x128xf32, #tpu.memory_space<vmem>>, vector<8x128xf32>,
    %c0_i32_48 = arith.constant 0 : i32
    %76 = arith.cmpi eq, %arg1, %c0_i32_48 : i32
    %77 = arith.extui %76 : i1 to i32
    %c0_i32_49 = arith.constant 0 : i32
    %78 = arith.cmpi ne, %77, %c0_i32_49 : i32
    scf.if %78 {
      %c0_50 = arith.constant 0 : index
      %c0_51 = arith.constant 0 : index
      %c0_52 = arith.constant 0 : index
      %79 = vector.load %arg5[%c0_50, %c0_51, %c0_52] : memref<2x8x128xf32, #tpu.memory_space<vmem>>, vector<2x8x128xf32>
      %cst_53 = arith.constant dense<0.000000e+00> : vector<2x128xf32>
      %80 = vector.multi_reduction <add>, %79, %cst_53 [1] : vector<2x8x128xf32> to vector<2x128xf32>
      %c0_54 = arith.constant 0 : index
      %c0_55 = arith.constant 0 : index
      %c0_56 = arith.constant 0 : index
      %81 = vector.load %arg4[%c0_54, %c0_55, %c0_56] : memref<1x5x128xf32, #tpu.memory_space<vmem>>, vector<1x2x128xf32>
      %82 = vector.shape_cast %81 : vector<1x2x128xf32> to vector<2x128xf32>
      %83 = vector.shape_cast %80 : vector<2x128xf32> to vector<1x2x128xf32>
      tpu.vector_store %arg4[%c0_54, %c0_55, %c0_56], %83 {strides = array<i32>} : memref<1x5x128xf32, #tpu.memory_space<vmem>>, vector<1x2x128xf32>,
      %c0_57 = arith.constant 0 : index
      %c0_58 = arith.constant 0 : index
      %c0_59 = arith.constant 0 : index
      %84 = vector.load %arg6[%c0_57, %c0_58, %c0_59] : memref<2x8x128xf32, #tpu.memory_space<vmem>>, vector<2x8x128xf32>
      %cst_60 = arith.constant dense<0.000000e+00> : vector<2x128xf32>
      %85 = vector.multi_reduction <add>, %84, %cst_60 [1] : vector<2x8x128xf32> to vector<2x128xf32>
      %c0_61 = arith.constant 0 : index
      %c2 = arith.constant 2 : index
      %c0_62 = arith.constant 0 : index
      %86 = vector.load %arg4[%c0_61, %c2, %c0_62] : memref<1x5x128xf32, #tpu.memory_space<vmem>>, vector<1x2x128xf32>
      %87 = vector.shape_cast %86 : vector<1x2x128xf32> to vector<2x128xf32>
      %88 = vector.shape_cast %85 : vector<2x128xf32> to vector<1x2x128xf32>
      tpu.vector_store %arg4[%c0_61, %c2, %c0_62], %88 {strides = array<i32>} : memref<1x5x128xf32, #tpu.memory_space<vmem>>, vector<1x2x128xf32>,
      %c0_63 = arith.constant 0 : index
      %c0_64 = arith.constant 0 : index
      %89 = vector.load %arg7[%c0_63, %c0_64] : memref<8x128xf32, #tpu.memory_space<vmem>>, vector<8x128xf32>
      %cst_65 = arith.constant dense<0.000000e+00> : vector<128xf32>
      %90 = vector.multi_reduction <add>, %89, %cst_65 [0] : vector<8x128xf32> to vector<128xf32>
      %91 = vector.shape_cast %90 : vector<128xf32> to vector<1x128xf32>
      %c0_66 = arith.constant 0 : index
      %c4 = arith.constant 4 : index
      %c0_67 = arith.constant 0 : index
      %92 = vector.load %arg4[%c0_66, %c4, %c0_67] : memref<1x5x128xf32, #tpu.memory_space<vmem>>, vector<1x1x128xf32>
      %93 = vector.shape_cast %92 : vector<1x1x128xf32> to vector<1x128xf32>
      %94 = vector.shape_cast %91 : vector<1x128xf32> to vector<1x1x128xf32>
      tpu.vector_store %arg4[%c0_66, %c4, %c0_67], %94 {strides = array<i32>} : memref<1x5x128xf32, #tpu.memory_space<vmem>>, vector<1x1x128xf32>,
    } else {
    }
    return
  }
  func.func @transform_0(%arg0: i32, %arg1: i32) -> (i32, i32, i32, i32, i32) {
    %c0_i32 = arith.constant 0 : i32
    %c0_i32_0 = arith.constant 0 : i32
    %c0_i32_1 = arith.constant 0 : i32
    %c0_i32_2 = arith.constant 0 : i32
    return %arg0, %c0_i32, %arg1, %c0_i32_0, %c0_i32_1 : i32, i32, i32, i32, i32
  }
  func.func @transform_1(%arg0: i32, %arg1: i32) -> (i32, i32, i32, i32) {
    %c0_i32 = arith.constant 0 : i32
    %c0_i32_0 = arith.constant 0 : i32
    %c0_i32_1 = arith.constant 0 : i32
    return %arg0, %arg1, %c0_i32, %c0_i32_0 : i32, i32, i32, i32
  }
  func.func @transform_2(%arg0: i32, %arg1: i32) -> (i32, i32, i32) {
    %c0_i32 = arith.constant 0 : i32
    %c0_i32_0 = arith.constant 0 : i32
    %c0_i32_1 = arith.constant 0 : i32
    return %arg0, %c0_i32, %c0_i32_0 : i32, i32, i32
  }
}

</mosaic_0001>

<llo_original>
// kernel: tpu_custom_call.1
$region0: #{tpu_custom_call.1}
  #allocation0 [shape = 'u32[]', space=smem, size = 0x4, offset = 0x4, fixed_abs, tag = 'smem constant byte address 0x4 - core index']
  #allocation1 [shape = 'u32[144,128]{1,0:T(1,128)}', space=vmem, size = 0x12000, scoped, tag = 'internal scratch']
  #allocation2 [shape = 'f32[2,8,128]{2,1,0:T(8,128)}', space=vmem, size = 0x2000, scoped, tag = 'scratch operand']
  #allocation3 [shape = 'f32[2,8,128]{2,1,0:T(8,128)}', space=vmem, size = 0x2000, scoped, tag = 'scratch operand']
  #allocation4 [shape = 'f32[8,128]{1,0:T(8,128)}', space=vmem, size = 0x1000, scoped, tag = 'scratch operand']
  %s0 = inlined_call_operand.hbm [shape: f32[2,2,1,8,128], index: 0, kind: input, shape index: {}]
  %s1 = inlined_call_operand.hbm [shape: s32[2,1,8,128], index: 1, kind: input, shape index: {}]
  %s2 = inlined_call_operand.vmem [shape: f32[2,5,128], index: 2, kind: output, shape index: {}]
  %s3 = sld [smem:[#allocation0]]
  $region57: #{tpu_custom_call.1} parent=0
    _
  %s5 = ssub.s32 1, %s3
  %s6 = scalar_select 0, %s5, %s3
  $region1: #{tpu_custom_call.1} parent=0
    #allocation5 [shape = 'u8[16384]{0}', space=vmem, size = 0x4000, scoped, tag = 'input window, operand 0']
    #allocation6 [shape = 's32[2]{0}', space=sflag, size = 0x8, scoped, tag = 'scoped memory for tpu_custom_call.1']
    #allocation7 [shape = 'u8[8192]{0}', space=vmem, size = 0x2000, scoped, tag = 'input window, operand 1']
    #allocation8 [shape = 's32[2]{0}', space=sflag, size = 0x8, scoped, tag = 'scoped memory for tpu_custom_call.1']
    %7 = vsyncpa [#allocation6], 0
    %s8 = scalar_lea.sflag [#allocation6], 1
    %9 = vsyncpa %s8, 0
    %10 = vsyncpa [#allocation8], 0
    %s11 = scalar_lea.sflag [#allocation8], 1
    %12 = vsyncpa %s11, 0
    loop: start=0, step=1, limit=4
    $region2: #{tpu_custom_call.1} parent=1 // loop_pre_header
      _
    $region3: #{tpu_custom_call.1} parent=1 // loop_header
      %s14 = sphi 0, %s18
      %p15 = scmp.ge.s32.totalorder %s14, 4
      %s21 = sphi 0, %s33
      %s22 = sphi 0, %s29
      %s23 = sphi 0, %s21
      %s24 = sphi 0, %s22
      %s25 = sphi 0, %s23
      %s26 = sphi 0, %s24
      %s38 = sphi 0, %s40
      %s41 = sphi 0, %s38
      %s42 = sphi 0, %s41
      %s58 = sphi 0, %s42
      %s66 = sphi 0, %s68
      %s69 = sphi 0, %s66
      %s70 = sphi 0, %s69
      %s86 = sphi 0, %s70
      %s92 = sphi 0, %s94
      %s95 = sphi 0, %s92
      %s96 = sphi 0, %s95
      %s112 = sphi 0, %s96
    $region4: #{tpu_custom_call.1} parent=1 // loop_header_branch
      %17 = sbr.rel (%p15) target = $region8
    $region5: #{tpu_custom_call.1} parent=1 // loop_body
      %s19 = ssub.s32 %s14, 1
      %s20 = ssub.s32 %s14, 2
      %s27 = sadd.s32 1, %s22
      %p28 = scmp.ge.s32.totalorder %s27, 1
      %s29 = scalar_select %p28, 0, %s27
      %s30 = sadd.s32 1, %s21
      %s31 = scalar_select %p28, %s30, %s21
      %p32 = scmp.ge.s32.totalorder %s31, 2
      %s33 = scalar_select %p32, 0, %s31
      %s34 = ssub.s32 %s21, %s33
      %s35 = ssub.s32 %s22, %s29
      %s36 = sor.u32 %s34, %s35
      %p37 = scmp.eq.s32.totalorder %s36, 0
      %s39 = sadd.s32 %s38, 1
      %s40 = scalar_select %p37, %s38, %s39
      %p43 = pneg %p37
      %p44 = scmp.eq.s32.totalorder %s14, 1
      %p45 = por %p43, %p44
      %p46 = scmp.ne.s32.totalorder %s38, %s41
      %p47 = scmp.eq.s32.totalorder %s14, 0
      %p48 = por %p46, %p47
      %p49 = scmp.ne.s32.totalorder %s38, %s41
      %p50 = scmp.eq.s32.totalorder %s19, 1
      %p51 = por %p49, %p50
      %p52 = scmp.ne.s32.totalorder %s41, %s42
      %p53 = scmp.eq.s32.totalorder %s19, 0
      %p54 = por %p52, %p53
      %p55 = scmp.ne.s32.totalorder %s41, %s42
      %p56 = scmp.eq.s32.totalorder %s20, 1
      %p57 = por %p55, %p56
      %p59 = scmp.ne.s32.totalorder %s42, %s58
      %p60 = scmp.eq.s32.totalorder %s20, 0
      %p61 = por %p59, %p60
      %s62 = ssub.s32 %s21, %s33
      %s63 = ssub.s32 %s22, %s29
      %s64 = sor.u32 %s62, %s63
      %p65 = scmp.eq.s32.totalorder %s64, 0
      %s67 = sadd.s32 %s66, 1
      %s68 = scalar_select %p65, %s66, %s67
      %p71 = pneg %p65
      %p72 = scmp.eq.s32.totalorder %s14, 1
      %p73 = por %p71, %p72
      %p74 = scmp.ne.s32.totalorder %s66, %s69
      %p75 = scmp.eq.s32.totalorder %s14, 0
      %p76 = por %p74, %p75
      %p77 = scmp.ne.s32.totalorder %s66, %s69
      %p78 = scmp.eq.s32.totalorder %s19, 1
      %p79 = por %p77, %p78
      %p80 = scmp.ne.s32.totalorder %s69, %s70
      %p81 = scmp.eq.s32.totalorder %s19, 0
      %p82 = por %p80, %p81
      %p83 = scmp.ne.s32.totalorder %s69, %s70
      %p84 = scmp.eq.s32.totalorder %s20, 1
      %p85 = por %p83, %p84
      %p87 = scmp.ne.s32.totalorder %s70, %s86
      %p88 = scmp.eq.s32.totalorder %s20, 0
      %p89 = por %p87, %p88
      %s90 = ssub.s32 %s21, %s33
      %p91 = scmp.eq.s32.totalorder %s90, 0
      %s93 = sadd.s32 %s92, 1
      %s94 = scalar_select %p91, %s92, %s93
      %p97 = pneg %p91
      %p98 = scmp.eq.s32.totalorder %s14, 1
      %p99 = por %p97, %p98
      %p100 = scmp.ne.s32.totalorder %s92, %s95
      %p101 = scmp.eq.s32.totalorder %s14, 0
      %p102 = por %p100, %p101
      %p103 = scmp.ne.s32.totalorder %s92, %s95
      %p104 = scmp.eq.s32.totalorder %s19, 1
      %p105 = por %p103, %p104
      %p106 = scmp.ne.s32.totalorder %s95, %s96
      %p107 = scmp.eq.s32.totalorder %s19, 0
      %p108 = por %p106, %p107
      %p109 = scmp.ne.s32.totalorder %s95, %s96
      %p110 = scmp.eq.s32.totalorder %s20, 1
      %p111 = por %p109, %p110
      %p113 = scmp.ne.s32.totalorder %s96, %s112
      %p114 = scmp.eq.s32.totalorder %s20, 0
      %p115 = por %p113, %p114
      %p116 = scmp.le.s32.totalorder 1, %s14
      %p117 = scmp.lt.s32.totalorder %s14, 3
      %p118 = pnand %p116, %p117
      %p119 = pneg %p118
      // Predicated region
      $region9: #{tpu_custom_call.1} parent=5 // pred_check
        _
      $region10: #{tpu_custom_call.1} parent=5 // pred_check_branch
        %121 = sbr.rel (%p118) target = $region12
      $region11: #{tpu_custom_call.1} parent=5 // pred_region
        %s122 = ssub.s32 %s14, 1
      $region12: #{tpu_custom_call.1} parent=5 // pred_fallthru
        _
      %p123 = scmp.lt.s32.totalorder %s14, 2
      // Predicated region
      $region13: #{tpu_custom_call.1} parent=5 // pred_check
        %p124 = pneg %p123
      $region14: #{tpu_custom_call.1} parent=5 // pred_check_branch
        %126 = sbr.rel (%p124) target = $region16
      $region15: #{tpu_custom_call.1} parent=5 // pred_region
        // Predicated region
        $region17: #{tpu_custom_call.1} parent=15 // pred_check
          %p127 = pneg %p48
        $region18: #{tpu_custom_call.1} parent=15 // pred_check_branch
          %129 = sbr.rel (%p127) target = $region20
        $region19: #{tpu_custom_call.1} parent=15 // pred_region
          %s130 = sand.u32 %s38, 1
          %s131 = scalar_lea.sflag [#allocation6], %s130
          %s132 = sand.u32 %s38, 1
          %s133 = smul.addr %s132, 16
          %s134 = scalar_lea.vmem [#allocation5], %s133
          %s136 = ssub.s32 256, 256
          %137 = vsyncadd %s131, %s136
          %s138 = smul.addr %s21, 2
          %s139 = sadd.s32 %s22, %s138
          %s140 = smul.addr %s139, 128
          %s141 = scalar_lea.hbm %s0, %s140
          %s142 = sshll.u32 %s134, 4
          %s143 = int_to_ptr.vmem [resolvable:$true] %s142
          %148 = dma.hbm_to_vmem [thread:$0]  %s141, 256, %s143, %s131, 128, 128, 8
        $region20: #{tpu_custom_call.1} parent=15 // pred_fallthru
          _
        // Predicated region
        $region21: #{tpu_custom_call.1} parent=15 // pred_check
          %p149 = pneg %p76
        $region22: #{tpu_custom_call.1} parent=15 // pred_check_branch
          %151 = sbr.rel (%p149) target = $region24
        $region23: #{tpu_custom_call.1} parent=15 // pred_region
          %s152 = sand.u32 %s66, 1
          %s153 = scalar_lea.sflag [#allocation8], %s152
          %s154 = sand.u32 %s66, 1
          %s155 = smul.addr %s154, 8
          %s156 = scalar_lea.vmem [#allocation7], %s155
          %s158 = ssub.s32 128, 128
          %159 = vsyncadd %s153, %s158
          %s160 = sadd.s32 %s22, %s21
          %s161 = smul.addr %s160, 128
          %s162 = scalar_lea.hbm %s1, %s161
          %s164 = sshll.u32 %s156, 4
          %s165 = int_to_ptr.vmem [resolvable:$true] %s164
          %167 = dma.hbm_to_vmem [thread:$0]  %s162, 128, %s165, %s153
        $region24: #{tpu_custom_call.1} parent=15 // pred_fallthru
          _
      $region16: #{tpu_custom_call.1} parent=5 // pred_fallthru
        _
      %p168 = scmp.le.s32.totalorder 1, %s14
      %p169 = scmp.lt.s32.totalorder %s14, 3
      %p170 = pnand %p168, %p169
      %p171 = pneg %p170
      // Predicated region
      $region25: #{tpu_custom_call.1} parent=5 // pred_check
        _
      $region26: #{tpu_custom_call.1} parent=5 // pred_check_branch
        %173 = sbr.rel (%p170) target = $region28
      $region27: #{tpu_custom_call.1} parent=5 // pred_region
        %s174 = ssub.s32 %s14, 1
        %s175 = sand.u32 %s41, 1
        %s176 = scalar_lea.sflag [#allocation6], %s175
        %s177 = sand.u32 %s41, 1
        %s178 = smul.addr %s177, 16
        %s179 = scalar_lea.vmem [#allocation5], %s178
        // Predicated region
        $region29: #{tpu_custom_call.1} parent=27 // pred_check
          %p180 = pneg %p54
        $region30: #{tpu_custom_call.1} parent=27 // pred_check_branch
          %182 = sbr.rel (%p180) target = $region32
        $region31: #{tpu_custom_call.1} parent=27 // pred_region
          %183 = dma.done %s176, 256
        $region32: #{tpu_custom_call.1} parent=27 // pred_fallthru
          _
        %s184 = sand.u32 %s69, 1
        %s185 = scalar_lea.sflag [#allocation8], %s184
        %s186 = sand.u32 %s69, 1
        %s187 = smul.addr %s186, 8
        %s188 = scalar_lea.vmem [#allocation7], %s187
        // Predicated region
        $region33: #{tpu_custom_call.1} parent=27 // pred_check
          %p189 = pneg %p82
        $region34: #{tpu_custom_call.1} parent=27 // pred_check_branch
          %191 = sbr.rel (%p189) target = $region36
        $region35: #{tpu_custom_call.1} parent=27 // pred_region
          %192 = dma.done %s185, 128
        $region36: #{tpu_custom_call.1} parent=27 // pred_fallthru
          _
        %s193 = sand.u32 %s41, 1
        %s194 = scalar_lea.sflag [#allocation6], %s193
        %s195 = sand.u32 %s41, 1
        %s196 = smul.addr %s195, 16
        %s197 = scalar_lea.vmem [#allocation5], %s196
        %p198 = pneg %p54
        %p199 = pneg %p51
        %s200 = sand.u32 %s69, 1
        %s201 = scalar_lea.sflag [#allocation8], %s200
        %s202 = sand.u32 %s69, 1
        %s203 = smul.addr %s202, 8
        %s204 = scalar_lea.vmem [#allocation7], %s203
        %p205 = pneg %p82
        %p206 = pneg %p79
        %p207 = pneg %p108
        %p208 = pneg %p105
        %p209 = scmp.lt.s32.totalorder %s23, 1
        %s210 = scalar_select %p209, %s23, 1
        %s211 = smul.addr %s210, 8
        %s212 = scalar_lea.vmem %s2, %s211
        %p213 = scmp.lt.s32.totalorder %s23, 1
        %s214 = scalar_select %p213, %s23, 1
        %s215 = smul.addr %s214, 8
        %s216 = scalar_lea.vmem %s2, %s215
        %p217 = scmp.eq.s32.totalorder %s24, 0
        // Predicated region
        $region37: #{tpu_custom_call.1} parent=27 // pred_check
          %p218 = pneg %p217
        $region38: #{tpu_custom_call.1} parent=27 // pred_check_branch
          %220 = sbr.rel (%p218) target = $region40
        $region39: #{tpu_custom_call.1} parent=27 // pred_region
          %221 = vst [vmem:[#allocation2] sm:$0xff] 0.0
          %222 = vst [vmem:[#allocation2 + $0x8] sm:$0xff] 0.0
          %223 = vst [vmem:[#allocation3] sm:$0xff] 0.0
          %224 = vst [vmem:[#allocation3 + $0x8] sm:$0xff] 0.0
          %225 = vst [vmem:[#allocation4] sm:$0xff] 0.0
        $region40: #{tpu_custom_call.1} parent=27 // pred_fallthru
          _
        %v226 = vld [vmem:[%s188] sm:$0xff]
        %v227 = vld [vmem:[%s179] sm:$0xff]
        %s228 = scalar_lea.vmem %s179, 8 [#allocation5]
        %v229 = vld [vmem:[%s228] sm:$0xff]
        %v230 = vmax.f32 %v227, %v229
        %v231 = vsub.f32 %v227, %v230
        %v232 = vmul.f32 %v231, 1.442695
        %v233 = vpow.pop %v232
        %vm234 = vcmp.eq.s32.totalorder %v226, 0
        %v235 = vsel %vm234, 1, 0
        %v236 = vcvt.s32.f32 %v235
        %v237 = vmul.f32 %v227, %v236
        %v238 = vsub.f32 %v229, %v230
        %v239 = vmul.f32 %v238, 1.442695
        %v240 = vpow.pop %v239
        %v241 = vadd.f32 %v233, %v240
        %vm242 = vcmp.eq.s32.totalorder %v226, 1
        %v243 = vsel %vm242, 1, 0
        %v244 = vcvt.s32.f32 %v243
        %v245 = vmul.f32 %v229, %v244
        %v246 = vadd.f32 %v237, %v245
        %v247 = vrcp.pop %v241
        %v248 = vmul.f32 %v233, %v247
        %v249 = vld [vmem:[#allocation2] sm:$0xff]
        %v250 = vmul.f32 %v248, %v236
        %v251 = vadd.f32 %v250, 0.0
        %v252 = vadd.f32 %v249, %v251
        %253 = vst [vmem:[#allocation2] sm:$0xff] %v252
        %v254 = vld [vmem:[#allocation3] sm:$0xff]
        %v255 = vadd.f32 %v248, %v236
        %v256 = vadd.f32 %v255, 0.0
        %v257 = vadd.f32 %v254, %v256
        %258 = vst [vmem:[#allocation3] sm:$0xff] %v257
        %v259 = vmul.f32 %v240, %v247
        %s260 = scalar_lea.vmem [#allocation2], 8
        %v261 = vld [vmem:[%s260] sm:$0xff]
        %v262 = vmul.f32 %v259, %v244
        %v263 = vadd.f32 %v262, 0.0
        %v264 = vadd.f32 %v261, %v263
        %265 = vst [vmem:[%s260] sm:$0xff] %v264
        %s266 = scalar_lea.vmem [#allocation3], 8
        %v267 = vld [vmem:[%s266] sm:$0xff]
        %v268 = vadd.f32 %v259, %v244
        %v269 = vadd.f32 %v268, 0.0
        %v270 = vadd.f32 %v267, %v269
        %271 = vst [vmem:[%s266] sm:$0xff] %v270
        %v272 = vld [vmem:[#allocation4] sm:$0xff]
        %v273 = vlog2.pop %v241
        %v274 = vmul.f32 %v273, 0.6931472
        %v275 = vadd.f32 %v274, %v230
        %v276 = vsub.f32 %v275, %v246
        %v277 = vadd.f32 %v276, 0.0
        %v278 = vadd.f32 %v272, %v277
        %279 = vst [vmem:[#allocation4] sm:$0xff] %v278
        // Predicated region
        $region41: #{tpu_custom_call.1} parent=27 // pred_check
          %p280 = pneg %p217
        $region42: #{tpu_custom_call.1} parent=27 // pred_check_branch
          %282 = sbr.rel (%p280) target = $region44
        $region43: #{tpu_custom_call.1} parent=27 // pred_region
          %v283 = vld [vmem:[#allocation2] sm:$0xff]
          %v284 = vld [vmem:[#allocation2 + $0x8] sm:$0xff]
          %v285 = vrot.slane %v283, 4
          %v286 = vadd.f32 %v283, %v285
          %v287 = vrot.slane %v286, 2
          %v288 = vadd.f32 %v286, %v287
          %v289 = vrot.slane %v288, 1
          %v290 = vadd.f32 %v288, %v289
          %v291 = vrot.slane %v284, 4
          %v292 = vadd.f32 %v284, %v291
          %v293 = vrot.slane %v292, 2
          %v294 = vadd.f32 %v292, %v293
          %v295 = vrot.slane %v294, 1
          %v296 = vadd.f32 %v294, %v295
          %vm299 = vcmask 1041409
          %v300 = vsel %vm299, %v296, %v290
          %302 = vst [vmem:[%s216] sm:$0x3] %v300
          %v303 = vld [vmem:[#allocation3] sm:$0xff]
          %v304 = vld [vmem:[#allocation3 + $0x8] sm:$0xff]
          %v305 = vrot.slane %v303, 4
          %v306 = vadd.f32 %v303, %v305
          %v307 = vrot.slane %v306, 2
          %v308 = vadd.f32 %v306, %v307
          %v309 = vrot.slane %v308, 1
          %v310 = vadd.f32 %v308, %v309
          %v311 = vrot.slane %v304, 4
          %v312 = vadd.f32 %v304, %v311
          %v313 = vrot.slane %v312, 2
          %v314 = vadd.f32 %v312, %v313
          %v315 = vrot.slane %v314, 1
          %v316 = vadd.f32 %v314, %v315
          %v319 = vsel %vm299, %v316, %v310
          %321 = vst [vmem:[%s216 + $0x2] sm:$0x3] %v319
          %v322 = vld [vmem:[#allocation4] sm:$0xff]
          %v323 = vrot.slane %v322, 4
          %v324 = vadd.f32 %v322, %v323
          %v325 = vrot.slane %v324, 2
          %v326 = vadd.f32 %v324, %v325
          %v327 = vrot.slane %v326, 1
          %v328 = vadd.f32 %v326, %v327
          %329 = vst [vmem:[%s216 + $0x4] sm:$0x1] %v328
        $region44: #{tpu_custom_call.1} parent=27 // pred_fallthru
          _
        %p330 = scmp.lt.s32.totalorder %s23, 1
        %s331 = scalar_select %p330, %s23, 1
        %s332 = smul.addr %s331, 8
        %s333 = scalar_lea.vmem %s2, %s332
        // Predicated region
        $region45: #{tpu_custom_call.1} parent=27 // pred_check
          %p334 = pneg %p105
        $region46: #{tpu_custom_call.1} parent=27 // pred_check_branch
          %336 = sbr.rel (%p334) target = $region48
        $region47: #{tpu_custom_call.1} parent=27 // pred_region
          _
        $region48: #{tpu_custom_call.1} parent=27 // pred_fallthru
          _
      $region28: #{tpu_custom_call.1} parent=5 // pred_fallthru
        _
      %p337 = scmp.le.s32.totalorder 2, %s14
      // Predicated region
      $region49: #{tpu_custom_call.1} parent=5 // pred_check
        %p338 = pneg %p337
      $region50: #{tpu_custom_call.1} parent=5 // pred_check_branch
        %340 = sbr.rel (%p338) target = $region52
      $region51: #{tpu_custom_call.1} parent=5 // pred_region
        %s341 = ssub.s32 %s14, 2
        // Predicated region
        $region53: #{tpu_custom_call.1} parent=51 // pred_check
          %p342 = pneg %p111
        $region54: #{tpu_custom_call.1} parent=51 // pred_check_branch
          %344 = sbr.rel (%p342) target = $region56
        $region55: #{tpu_custom_call.1} parent=51 // pred_region
          %p345 = scmp.lt.s32.totalorder %s25, 1
          %s346 = scalar_select %p345, %s25, 1
          %s347 = smul.addr %s346, 8
          %s348 = scalar_lea.vmem %s2, %s347
        $region56: #{tpu_custom_call.1} parent=51 // pred_fallthru
          _
      $region52: #{tpu_custom_call.1} parent=5 // pred_fallthru
        _
    $region6: #{tpu_custom_call.1} parent=1 // loop_footer
      %s18 = sadd.s32 1, %s14
    $region7: #{tpu_custom_call.1} parent=1 // loop_footer_branch
      %13 = sbr.rel target = $region3
    $region8: #{tpu_custom_call.1} parent=1 // loop_exit
      _
    %349 = vsyncpa [#allocation6], 1
    %s350 = scalar_lea.sflag [#allocation6], 1
    %351 = vsyncpa %s350, 1
    %352 = vsyncpa [#allocation8], 1
    %s353 = scalar_lea.sflag [#allocation8], 1
    %354 = vsyncpa %s353, 1

</llo_original>
